<compile_context>
chip_gen: v5e
topology: v5e:2x2
jax: 0.10.0
libtpu: 0.0.40
codegen_flags: <defaults>
</compile_context>

<pallas_src>
import math

import jax
import jax.numpy as jnp
from jax.experimental import pallas as pl
from jax.experimental.pallas import tpu as pltpu

_LANE = 128
_SUBLANE = 8
# ~2 MiB of x per tile; with double-buffered x + out (+ tiny param blocks) this
# is roughly 4x that live in VMEM -> safe on every generation's default limit.
_TARGET_TILE_BYTES = 2 * 1024 * 1024


# ---------------------------------------------------------------------------
# Kernels: out = x * w (+ b), with w/b broadcasting over lanes or sublanes.
# ---------------------------------------------------------------------------
def _affine_bias_kernel(x_ref, w_ref, b_ref, o_ref):
    o_ref[...] = (x_ref[...] * w_ref[...] + b_ref[...]).astype(o_ref.dtype)


def _affine_nobias_kernel(x_ref, w_ref, o_ref):
    o_ref[...] = (x_ref[...] * w_ref[...]).astype(o_ref.dtype)


def _pick_tile(n, unit, cap):
    """Tile for a dim of length n: the full dim if it fits under `cap`, else the
    largest multiple of `unit` <= cap (preferring one that divides n evenly)."""
    if n <= cap:
        return n
    cap_u = max(unit, (cap // unit) * unit)
    for t in range(cap_u, unit - 1, -unit):
        if n % t == 0:
            return t
    return cap_u


def _run_affine(x2, w2, b2, out_dtype, params_along_rows):
    """x2: (R, L).  params_along_rows=True  -> w2/b2 are (R, 1)
                    params_along_rows=False -> w2/b2 are (1, L)."""
    R, L = x2.shape
    itemsize = max(jnp.dtype(x2.dtype).itemsize, jnp.dtype(out_dtype).itemsize)

    TL = _pick_tile(L, _LANE, min(L, 4096))                      # lane-dense
    row_cap = max(_SUBLANE, (_TARGET_TILE_BYTES // itemsize) // max(TL, 1))
    TR = _pick_tile(R, _SUBLANE, min(R, row_cap))                # sublane-dense

    grid = (pl.cdiv(R, TR), pl.cdiv(L, TL))

    x_spec = pl.BlockSpec((TR, TL), lambda i, j: (i, j))
    out_spec = pl.BlockSpec((TR, TL), lambda i, j: (i, j))
    if params_along_rows:
        p_spec = pl.BlockSpec((TR, 1), lambda i, j: (i, 0))
    else:
        p_spec = pl.BlockSpec((1, TL), lambda i, j: (0, j))

    if b2 is not None:
        kernel = _affine_bias_kernel
        in_specs = [x_spec, p_spec, p_spec]
        args = (x2, w2, b2)
    else:
        kernel = _affine_nobias_kernel
        in_specs = [x_spec, p_spec]
        args = (x2, w2)

    return pl.pallas_call(
        kernel,
        out_shape=jax.ShapeDtypeStruct((R, L), out_dtype),
        grid=grid,
        in_specs=in_specs,
        out_specs=out_spec,
        compiler_params=pltpu.CompilerParams(
            dimension_semantics=("parallel", "parallel")),
    )(*args)


# ---------------------------------------------------------------------------
# Wrapper that mirrors Affine.forward
# ---------------------------------------------------------------------------
def affine_forward(x, weight, bias=None, dim=None):
    size = x.shape
    num_features = weight.shape[0]

    if dim is None:
        # Faithful reproduction of the PyTorch auto-discovery (it enumerates
        # size[1:] but uses the resulting index against the full shape).
        for index, d in enumerate(size[1:]):
            if d == num_features:
                dim = index
                break
        else:
            raise ValueError("There is no dimension to apply Affine module.")

    if size[dim] != num_features:
        raise ValueError(
            f"size[dim]={size[dim]} does not match num_features={num_features}")

    C = num_features
    P = int(math.prod(size[:dim]))        # product of leading dims (1 if none)
    M = int(math.prod(size[dim + 1:]))    # product of trailing dims (1 if none)

    # PyTorch promotes (weight * x [+ bias]) to the common dtype.
    out_dtype = jnp.result_type(x.dtype, weight.dtype)
    if bias is not None:
        out_dtype = jnp.result_type(out_dtype, bias.dtype)

    if M > 1:
        # Natural rows view: (P*C, M).  Free reshape, no HBM transpose.
        x2 = x.reshape(P * C, M)
        w2 = jnp.tile(weight, P).reshape(P * C, 1)
        b2 = jnp.tile(bias, P).reshape(P * C, 1) if bias is not None else None
        out2 = _run_affine(x2, w2, b2, out_dtype, params_along_rows=True)
    else:
        # Affine dim is innermost: channel goes along lanes.
        x2 = x.reshape(P, C)
        w2 = weight.reshape(1, C)
        b2 = bias.reshape(1, C) if bias is not None else None
        out2 = _run_affine(x2, w2, b2, out_dtype, params_along_rows=False)

    return out2.reshape(size)


# ---------------------------------------------------------------------------
# Demo / correctness check
# ---------------------------------------------------------------------------
if __name__ == "__main__":
    key = jax.random.PRNGKey(0)
    kx, kw, kb, kx2, kw2, kb2 = jax.random.split(key, 6)

    # 1) NCHW input, channel-wise affine (dim=1), like BatchNorm's affine part.
    N, C, H, W = 2, 4, 16, 16
    x = jax.random.normal(kx, (N, C, H, W), dtype=jnp.float32)
    weight = jax.random.normal(kw, (C,), dtype=jnp.float32)
    bias = jax.random.normal(kb, (C,), dtype=jnp.float32)

    out = jax.block_until_ready(affine_forward(x, weight, bias, dim=1))
    ref = x * weight.reshape(1, C, 1, 1) + bias.reshape(1, C, 1, 1)
    assert out.shape == x.shape and out.dtype == x.dtype
    assert jnp.allclose(out, ref, atol=1e-6, rtol=1e-6)

    # 2) bias=False path of the module.
    out_nb = jax.block_until_ready(affine_forward(x, weight, None, dim=1))
    ref_nb = x * weight.reshape(1, C, 1, 1)
    assert jnp.allclose(out_nb, ref_nb, atol=1e-6, rtol=1e-6)

    # 3) Affine over the innermost (hidden) dim, e.g. (batch, seq, hidden).
    B, S, D = 2, 8, 32
    x3 = jax.random.normal(kx2, (B, S, D), dtype=jnp.float32)
    w3 = jax.random.normal(kw2, (D,), dtype=jnp.float32)
    b3 = jax.random.normal(kb2, (D,), dtype=jnp.float32)
    out3 = jax.block_until_ready(affine_forward(x3, w3, b3, dim=2))
    ref3 = x3 * w3.reshape(1, 1, D) + b3.reshape(1, 1, D)
    assert jnp.allclose(out3, ref3, atol=1e-6, rtol=1e-6)

    print("KERNEL_OK")
</pallas_src>

<mosaic_0001>
module attributes {stable_mosaic.version = 11 : i64} {
  func.func @_affine_bias_kernel(%arg0: i32, %arg1: i32, %arg2: memref<8x256xf32, #tpu.memory_space<vmem>>, %arg3: memref<8x1xf32, #tpu.memory_space<vmem>>, %arg4: memref<8x1xf32, #tpu.memory_space<vmem>>, %arg5: memref<8x256xf32, #tpu.memory_space<vmem>>) attributes {dimension_semantics = [#tpu.dimension_semantics<parallel>, #tpu.dimension_semantics<parallel>], iteration_bounds = array<i64: 1, 1>, scalar_prefetch = 0 : i64, scratch_operands = 0 : i64, tpu.core_type = #tpu.core_type<tc>, window_params = [{transform_indices = @transform_0, window_bounds = array<i64: 8, 256>}, {transform_indices = @transform_1, window_bounds = array<i64: 8, 1>}, {transform_indices = @transform_2, window_bounds = array<i64: 8, 1>}, {transform_indices = @transform_3, window_bounds = array<i64: 8, 256>}]} {
    %c0 = arith.constant 0 : index
    %c0_0 = arith.constant 0 : index
    %0 = vector.load %arg2[%c0, %c0_0] : memref<8x256xf32, #tpu.memory_space<vmem>>, vector<8x256xf32>
    %c0_1 = arith.constant 0 : index
    %c0_2 = arith.constant 0 : index
    %1 = vector.load %arg3[%c0_1, %c0_2] : memref<8x1xf32, #tpu.memory_space<vmem>>, vector<8x1xf32>
    %2 = vector.broadcast %1 : vector<8x1xf32> to vector<8x256xf32>
    %3 = arith.mulf %0, %2 : vector<8x256xf32>
    %c0_3 = arith.constant 0 : index
    %c0_4 = arith.constant 0 : index
    %4 = vector.load %arg4[%c0_3, %c0_4] : memref<8x1xf32, #tpu.memory_space<vmem>>, vector<8x1xf32>
    %5 = vector.broadcast %4 : vector<8x1xf32> to vector<8x256xf32>
    %6 = arith.addf %3, %5 : vector<8x256xf32>
    %c0_5 = arith.constant 0 : index
    %c0_6 = arith.constant 0 : index
    %7 = vector.load %arg5[%c0_5, %c0_6] : memref<8x256xf32, #tpu.memory_space<vmem>>, vector<8x256xf32>
    tpu.vector_store %arg5[%c0_5, %c0_6], %6 {strides = array<i32>} : memref<8x256xf32, #tpu.memory_space<vmem>>, vector<8x256xf32>,
    return
  }
  func.func @transform_0(%arg0: i32, %arg1: i32) -> (i32, i32) {
    %c0_i32 = arith.constant 0 : i32
    return %arg0, %arg1 : i32, i32
  }
  func.func @transform_1(%arg0: i32, %arg1: i32) -> (i32, i32) {
    %c0_i32 = arith.constant 0 : i32
    %c0_i32_0 = arith.constant 0 : i32
    return %arg0, %c0_i32 : i32, i32
  }
  func.func @transform_2(%arg0: i32, %arg1: i32) -> (i32, i32) {
    %c0_i32 = arith.constant 0 : i32
    %c0_i32_0 = arith.constant 0 : i32
    return %arg0, %c0_i32 : i32, i32
  }
  func.func @transform_3(%arg0: i32, %arg1: i32) -> (i32, i32) {
    %c0_i32 = arith.constant 0 : i32
    return %arg0, %arg1 : i32, i32
  }
}

</mosaic_0001>

<llo_original>
// kernel: tpu_custom_call.1
$region0: #{tpu_custom_call.1}
  #allocation0 [shape = 'u32[]', space=smem, size = 0x4, offset = 0x4, fixed_abs, tag = 'smem constant byte address 0x4 - core index']
  #allocation1 [shape = 'u32[72,128]{1,0:T(1,128)}', space=vmem, size = 0x9000, scoped, tag = 'internal scratch']
  %s0 = inlined_call_operand.vmem [shape: f32[8,256], index: 0, kind: input, shape index: {}]
  %s1 = inlined_call_operand.vmem [shape: f32[8,1], index: 1, kind: input, shape index: {}]
  %s2 = inlined_call_operand.vmem [shape: f32[8,1], index: 2, kind: input, shape index: {}]
  %s3 = inlined_call_operand.hbm [shape: f32[8,256], index: 3, kind: output, shape index: {}]
  %s4 = sld [smem:[#allocation0]]
  $region22: #{tpu_custom_call.1} parent=0
    _
  %s6 = ssub.s32 1, %s4
  %s7 = scalar_select 0, %s6, %s4
  $region1: #{tpu_custom_call.1} parent=0
    #allocation2 [shape = 'u8[8192]{0}', space=vmem, size = 0x2000, scoped, tag = 'output window, operand 0, single buffered']
    #allocation3 [shape = 's32[1]{0}', space=sflag, size = 0x4, scoped, tag = 'scoped memory for tpu_custom_call.1']
    %8 = vsyncpa [#allocation3], 0
    // Predicated region
    $region2: #{tpu_custom_call.1} parent=1 // pred_check
      _
    $region3: #{tpu_custom_call.1} parent=1 // pred_check_branch
      %10 = sbr.rel (0) target = $region5
    $region4: #{tpu_custom_call.1} parent=1 // pred_region
      _
    $region5: #{tpu_custom_call.1} parent=1 // pred_fallthru
      _
    // Predicated region
    $region6: #{tpu_custom_call.1} parent=1 // pred_check
      _
    $region7: #{tpu_custom_call.1} parent=1 // pred_check_branch
      %12 = sbr.rel (0) target = $region9
    $region8: #{tpu_custom_call.1} parent=1 // pred_region
      _
    $region9: #{tpu_custom_call.1} parent=1 // pred_fallthru
      _
    // Predicated region
    $region10: #{tpu_custom_call.1} parent=1 // pred_check
      _
    $region11: #{tpu_custom_call.1} parent=1 // pred_check_branch
      %14 = sbr.rel (0) target = $region13
    $region12: #{tpu_custom_call.1} parent=1 // pred_region
      _
    $region13: #{tpu_custom_call.1} parent=1 // pred_fallthru
      _
    %v15 = vld [vmem:[%s0] sm:$0xff]
    %v16 = vld [vmem:[%s0 + $0x8] sm:$0xff]
    %v17 = vld [vmem:[%s1] sm:$0xff]
    %19 = vset.pattern.permute.xlu0 0
    %20 = vperm.xlu0 %19, %v17
    %v21 = vpop.permute.xlu0 %20
    %v23 = vmul.f32 %v15, %v21
    %v24 = vmul.f32 %v16, %v21
    %v25 = vld [vmem:[%s2] sm:$0xff]
    %27 = vset.pattern.permute.xlu0 0
    %28 = vperm.xlu0 %27, %v25
    %v29 = vpop.permute.xlu0 %28
    %v31 = vadd.f32 %v23, %v29
    %v32 = vadd.f32 %v24, %v29
    %33 = vst [vmem:[#allocation2] sm:$0xff] %v31
    %34 = vst [vmem:[#allocation2 + $0x8] sm:$0xff] %v32
    // Predicated region
    $region14: #{tpu_custom_call.1} parent=1 // pred_check
      _
    $region15: #{tpu_custom_call.1} parent=1 // pred_check_branch
      %36 = sbr.rel (0) target = $region17
    $region16: #{tpu_custom_call.1} parent=1 // pred_region
      %38 = vsyncadd [#allocation3], 0
      %s40 = sshll.u32 [#allocation2], 4
      %s41 = int_to_ptr.vmem [resolvable:$true] %s40
      %s42 = sshll.u32 %s3, 4
      %s43 = int_to_ptr.hbm [resolvable:$true] %s42
      %45 = dma.vmem_to_hbm [thread:$0]  %s41, 256, %s43, [#allocation3]
    $region17: #{tpu_custom_call.1} parent=1 // pred_fallthru
      _
    // Predicated region
    $region18: #{tpu_custom_call.1} parent=1 // pred_check
      _
    $region19: #{tpu_custom_call.1} parent=1 // pred_check_branch
      %47 = sbr.rel (0) target = $region21
    $region20: #{tpu_custom_call.1} parent=1 // pred_region
      %49 = dma.done [#allocation3], 256
    $region21: #{tpu_custom_call.1} parent=1 // pred_fallthru
      _
    %50 = vsyncpa [#allocation3], 1

</llo_original>
